<compile_context>
chip_gen: v7x
topology: tpu7x:2x2x1
jax: 0.10.0
libtpu: 0.0.40
codegen_flags: <defaults>
</compile_context>

<pallas_src>
import functools

import jax
import jax.numpy as jnp
from jax.experimental import pallas as pl
from jax.experimental.pallas import tpu as pltpu

_LANES = 128          # vreg lane count
_SUBLANES = 8         # vreg sublane count (f32)
_TM_MAX = 2048        # rows per block -> (2048, 128) f32 = 1 MiB per input block
_PAD_LOGIT = -30000.0 # pad logit; with target 0 it contributes exactly 0 to both
                      # sums (bce == 0, t == 0), so no in-kernel mask is needed.
                      # Finite in f16/bf16/f32.


def _focal_kernel(x_ref, t_ref, sum_g_ref, sum_t_ref, acc_g, acc_t, *, gamma):
    j = pl.program_id(1)

    @pl.when(j == 0)
    def _init():
        acc_g[...] = jnp.zeros_like(acc_g)
        acc_t[...] = jnp.zeros_like(acc_t)

    # Narrow dtypes are DMA'd as-is; the upcast is cheap VPU filler.
    x = x_ref[...].astype(jnp.float32)
    t = t_ref[...].astype(jnp.float32)

    # binary_cross_entropy_with_logits, reduction='none' (stable form):
    #   bce = max(x, 0) - x*t + log(1 + exp(-|x|))
    # One EUP exp + one EUP log per element. pt = exp(-bce) is recovered
    # algebraically (exact for t in {0,1}) instead of a second exp:
    #   pt = select(sign(x) != t, exp(-|x|), 1) / (1 + exp(-|x|))
    s = jnp.exp(-jnp.abs(x))                                # EUP exp
    bce = jnp.maximum(x, 0.0) - x * t + jnp.log(1.0 + s)    # EUP log
    num = jnp.where(jnp.logical_xor(x >= 0.0, t > 0.5), s, 1.0)
    pt = num * pl.reciprocal(1.0 + s, approx=True)          # EUP vrcp (approx)

    omp = 1.0 - pt
    if isinstance(gamma, int):
        # Integer gamma (default 2): repeated VPU multiplies, never EUP pow.
        fw = jnp.ones_like(omp) if gamma == 0 else omp
        for _ in range(gamma - 1):
            fw = fw * omp
    else:
        fw = omp ** gamma   # float gamma falls back to the pow (exp/log) path
    g = fw * bce

    # Element-wise partial sums only (VPU per step); the cross-lane/sublane
    # XLU reduction is deferred to the single finalize step.
    acc_g[...] += g
    acc_t[...] += t

    @pl.when(j == pl.num_programs(1) - 1)
    def _finalize():
        sum_g_ref[...] = jnp.full((_SUBLANES, _LANES), jnp.sum(acc_g[...]),
                                  jnp.float32)
        sum_t_ref[...] = jnp.full((_SUBLANES, _LANES), jnp.sum(acc_t[...]),
                                  jnp.float32)


def weighted_focal_loss(inputs, targets, alpha=0.25, gamma=2):
    N, C, H, W = inputs.shape
    assert H == 1 and W == 1, "targets.squeeze(3).squeeze(2) implies H=W=1"
    m = N * C

    # Keep HBM traffic narrow: floating inputs keep their dtype (bf16 halves
    # bytes); targets are cast to the same narrow float ({0,1} is exact in
    # bf16). The f32 upcast happens inside the kernel.
    x_dtype = inputs.dtype if jnp.issubdtype(inputs.dtype, jnp.floating) else jnp.float32
    x = inputs.reshape(-1).astype(x_dtype)
    t = targets.reshape(-1).astype(x_dtype)

    # Lane+sublane-dense layout: pad up to whole (TM, 128) blocks. For very
    # small M (typical here since H=W=1) this is a single (8, 128) tile; a
    # fused XLA expression would avoid the ~us pallas_call overhead, but we
    # keep the Pallas path so the kernel is exercised.
    rows = max(_SUBLANES, -(-m // _LANES))
    rows = -(-rows // _SUBLANES) * _SUBLANES
    if rows <= _TM_MAX:
        tm, p, nb = rows, 1, 1
    else:
        tm = _TM_MAX
        nblocks = -(-rows // tm)
        p = 2 if nblocks >= 2 else 1      # 2-way "parallel" split (v7x 2 TCs)
        nblocks = -(-nblocks // p) * p
        nb = nblocks // p
    rows_total = p * nb * tm
    pad = rows_total * _LANES - m
    x = jnp.pad(x, (0, pad), constant_values=_PAD_LOGIT).reshape(rows_total, _LANES)
    t = jnp.pad(t, (0, pad), constant_values=0).reshape(rows_total, _LANES)

    in_map = lambda pi, j: (pi * nb + j, 0)
    out_map = lambda pi, j: (pi, 0)

    sum_g, sum_t = pl.pallas_call(
        functools.partial(_focal_kernel, gamma=gamma),
        out_shape=(jax.ShapeDtypeStruct((p * _SUBLANES, _LANES), jnp.float32),
                   jax.ShapeDtypeStruct((p * _SUBLANES, _LANES), jnp.float32)),
        grid_spec=pltpu.PrefetchScalarGridSpec(
            num_scalar_prefetch=0,
            grid=(p, nb),
            in_specs=[pl.BlockSpec((tm, _LANES), in_map),
                      pl.BlockSpec((tm, _LANES), in_map)],
            out_specs=(pl.BlockSpec((_SUBLANES, _LANES), out_map),
                       pl.BlockSpec((_SUBLANES, _LANES), out_map)),
            scratch_shapes=[pltpu.VMEM((tm, _LANES), jnp.float32),
                            pltpu.VMEM((tm, _LANES), jnp.float32)],
        ),
        compiler_params=pltpu.CompilerParams(
            dimension_semantics=("parallel", "arbitrary"),
            vmem_limit_bytes=32 * 1024 * 1024,
        ),
    )(x, t)

    # Combine per-core partial sums (a few scalar FMAs; fused by XLA).
    sg = jnp.sum(sum_g[::_SUBLANES, 0])
    st = jnp.sum(sum_t[::_SUBLANES, 0])
    # sum(at) = alpha*M + ((1-alpha) - alpha) * sum(t)   (targets in {0,1})
    sum_at = jnp.float32(alpha) * jnp.float32(m) + jnp.float32(1.0 - 2.0 * alpha) * st
    # mean over the broadcast (N, C, 1, N*C) tensor == sum_g * sum_at / M^2.
    # Use Python floats for the normalizer: M^2 can exceed int32 range and a
    # raw Python int would overflow when handed to the jitted computation.
    inv_m2 = jnp.float32(1.0 / (float(m) * float(m)))
    return sg * sum_at * inv_m2


def _reference(inputs, targets, alpha=0.25, gamma=2):
    """Pure-JAX replica of the torch forward (including the broadcast)."""
    x = inputs.astype(jnp.float32)
    t = targets.astype(jnp.float32)
    bce = jnp.maximum(x, 0.0) - x * t + jnp.log1p(jnp.exp(-jnp.abs(x)))
    alpha_vec = jnp.array([alpha, 1.0 - alpha], dtype=jnp.float32)
    at = alpha_vec[targets.reshape(-1).astype(jnp.int32)]      # (N*C,)
    pt = jnp.exp(-bce)
    f_loss = at * (1.0 - pt) ** gamma * bce                    # (N, C, 1, N*C)
    return jnp.mean(f_loss)


def _reference_factored(inputs, targets, alpha=0.25, gamma=2):
    """Same value as _reference without materializing the M x M broadcast."""
    x = inputs.reshape(-1).astype(jnp.float32)
    t = targets.reshape(-1).astype(jnp.float32)
    bce = jnp.maximum(x, 0.0) - x * t + jnp.log1p(jnp.exp(-jnp.abs(x)))
    pt = jnp.exp(-bce)
    g = (1.0 - pt) ** gamma * bce
    at = jnp.where(t > 0.5, 1.0 - alpha, alpha)
    mm = float(x.size)                       # python float: avoids int32 overflow
    return jnp.sum(g) * jnp.sum(at) * jnp.float32(1.0 / (mm * mm))


if __name__ == "__main__":
    key = jax.random.PRNGKey(0)
    k1, k2, k3, k4 = jax.random.split(key, 4)

    # Small case (matches the module's intended use: H = W = 1).
    N, C = 2, 4
    inputs = jax.random.normal(k1, (N, C, 1, 1), dtype=jnp.float32)
    targets = jax.random.bernoulli(k2, 0.5, (N, C, 1, 1)).astype(jnp.float32)
    loss = jax.block_until_ready(weighted_focal_loss(inputs, targets))
    ref = _reference(inputs, targets)
    assert jnp.allclose(loss, ref, rtol=2e-3, atol=1e-6), (loss, ref)

    # Larger case: exercises padding, multi-block accumulation and the 2-way
    # parallel grid split (broadcast reference would be M x M, so use the
    # factorized — mathematically identical — reference).
    N2, C2 = 2, 400_000
    inputs2 = jax.random.normal(k3, (N2, C2, 1, 1), dtype=jnp.float32)
    targets2 = jax.random.bernoulli(k4, 0.5, (N2, C2, 1, 1)).astype(jnp.float32)
    loss2 = jax.block_until_ready(weighted_focal_loss(inputs2, targets2))
    ref2 = _reference_factored(inputs2, targets2)
    assert jnp.allclose(loss2, ref2, rtol=2e-3, atol=1e-8), (loss2, ref2)

    print("KERNEL_OK")
</pallas_src>

<mosaic_0001>
module attributes {stable_mosaic.version = 11 : i64} {
  func.func @_focal_kernel(%arg0: i32, %arg1: i32, %arg2: memref<8x128xf32, #tpu.memory_space<vmem>>, %arg3: memref<8x128xf32, #tpu.memory_space<vmem>>, %arg4: memref<8x128xf32, #tpu.memory_space<vmem>>, %arg5: memref<8x128xf32, #tpu.memory_space<vmem>>, %arg6: memref<8x128xf32, #tpu.memory_space<vmem>>, %arg7: memref<8x128xf32, #tpu.memory_space<vmem>>) attributes {dimension_semantics = [#tpu.dimension_semantics<parallel>, #tpu.dimension_semantics<arbitrary>], iteration_bounds = array<i64: 1, 1>, scalar_prefetch = 0 : i64, scratch_operands = 2 : i64, tpu.core_type = #tpu.core_type<tc>, window_params = [{transform_indices = @transform_0, window_bounds = array<i64: 8, 128>}, {transform_indices = @transform_1, window_bounds = array<i64: 8, 128>}, {transform_indices = @transform_2, window_bounds = array<i64: 8, 128>}, {transform_indices = @transform_3, window_bounds = array<i64: 8, 128>}]} {
    %c0_i32 = arith.constant 0 : i32
    %0 = arith.cmpi eq, %arg1, %c0_i32 : i32
    %1 = arith.extui %0 : i1 to i32
    %c0_i32_0 = arith.constant 0 : i32
    %2 = arith.cmpi ne, %1, %c0_i32_0 : i32
    scf.if %2 {
      %cst_21 = arith.constant 0.000000e+00 : f32
      %41 = vector.broadcast %cst_21 : f32 to vector<8x128xf32>
      %c0_22 = arith.constant 0 : index
      %c0_23 = arith.constant 0 : index
      %42 = vector.load %arg6[%c0_22, %c0_23] : memref<8x128xf32, #tpu.memory_space<vmem>>, vector<8x128xf32>
      tpu.vector_store %arg6[%c0_22, %c0_23], %41 {strides = array<i32>} : memref<8x128xf32, #tpu.memory_space<vmem>>, vector<8x128xf32>,
      %cst_24 = arith.constant 0.000000e+00 : f32
      %43 = vector.broadcast %cst_24 : f32 to vector<8x128xf32>
      %c0_25 = arith.constant 0 : index
      %c0_26 = arith.constant 0 : index
      %44 = vector.load %arg7[%c0_25, %c0_26] : memref<8x128xf32, #tpu.memory_space<vmem>>, vector<8x128xf32>
      tpu.vector_store %arg7[%c0_25, %c0_26], %43 {strides = array<i32>} : memref<8x128xf32, #tpu.memory_space<vmem>>, vector<8x128xf32>,
    } else {
    }
    %c0 = arith.constant 0 : index
    %c0_1 = arith.constant 0 : index
    %3 = vector.load %arg2[%c0, %c0_1] : memref<8x128xf32, #tpu.memory_space<vmem>>, vector<8x128xf32>
    %c0_2 = arith.constant 0 : index
    %c0_3 = arith.constant 0 : index
    %4 = vector.load %arg3[%c0_2, %c0_3] : memref<8x128xf32, #tpu.memory_space<vmem>>, vector<8x128xf32>
    %5 = math.absf %3 : vector<8x128xf32>
    %cst = arith.constant 0.000000e+00 : f32
    %6 = vector.broadcast %cst : f32 to vector<8x128xf32>
    %7 = arith.subf %6, %5 : vector<8x128xf32>
    %8 = math.exp %7 : vector<8x128xf32>
    %cst_4 = arith.constant 0.000000e+00 : f32
    %9 = vector.broadcast %cst_4 : f32 to vector<8x128xf32>
    %10 = arith.maximumf %3, %9 : vector<8x128xf32>
    %11 = arith.mulf %3, %4 : vector<8x128xf32>
    %12 = arith.subf %10, %11 : vector<8x128xf32>
    %cst_5 = arith.constant 1.000000e+00 : f32
    %13 = vector.broadcast %cst_5 : f32 to vector<8x128xf32>
    %14 = arith.addf %13, %8 : vector<8x128xf32>
    %15 = math.log %14 : vector<8x128xf32>
    %16 = arith.addf %12, %15 : vector<8x128xf32>
    %cst_6 = arith.constant 0.000000e+00 : f32
    %17 = vector.broadcast %cst_6 : f32 to vector<8x128xf32>
    %18 = arith.cmpf oge, %3, %17 : vector<8x128xf32>
    %cst_7 = arith.constant 5.000000e-01 : f32
    %19 = vector.broadcast %cst_7 : f32 to vector<8x128xf32>
    %20 = arith.cmpf ogt, %4, %19 : vector<8x128xf32>
    %21 = arith.xori %18, %20 : vector<8x128xi1>
    %cst_8 = arith.constant 1.000000e+00 : f32
    %22 = vector.broadcast %cst_8 : f32 to vector<8x128xf32>
    %23 = arith.select %21, %8, %22 : vector<8x128xi1>, vector<8x128xf32>
    %cst_9 = arith.constant 1.000000e+00 : f32
    %24 = vector.broadcast %cst_9 : f32 to vector<8x128xf32>
    %25 = arith.addf %24, %8 : vector<8x128xf32>
    %26 = tpu.reciprocal %25 {approx = true} : vector<8x128xf32> -> vector<8x128xf32>
    %27 = arith.mulf %23, %26 : vector<8x128xf32>
    %cst_10 = arith.constant 1.000000e+00 : f32
    %28 = vector.broadcast %cst_10 : f32 to vector<8x128xf32>
    %29 = arith.subf %28, %27 : vector<8x128xf32>
    %30 = arith.mulf %29, %29 : vector<8x128xf32>
    %31 = arith.mulf %30, %16 : vector<8x128xf32>
    %c0_11 = arith.constant 0 : index
    %c0_12 = arith.constant 0 : index
    %32 = vector.load %arg6[%c0_11, %c0_12] : memref<8x128xf32, #tpu.memory_space<vmem>>, vector<8x128xf32>
    %33 = arith.addf %32, %31 : vector<8x128xf32>
    %c0_13 = arith.constant 0 : index
    %c0_14 = arith.constant 0 : index
    %34 = vector.load %arg6[%c0_13, %c0_14] : memref<8x128xf32, #tpu.memory_space<vmem>>, vector<8x128xf32>
    tpu.vector_store %arg6[%c0_13, %c0_14], %33 {strides = array<i32>} : memref<8x128xf32, #tpu.memory_space<vmem>>, vector<8x128xf32>,
    %c0_15 = arith.constant 0 : index
    %c0_16 = arith.constant 0 : index
    %35 = vector.load %arg7[%c0_15, %c0_16] : memref<8x128xf32, #tpu.memory_space<vmem>>, vector<8x128xf32>
    %36 = arith.addf %35, %4 : vector<8x128xf32>
    %c0_17 = arith.constant 0 : index
    %c0_18 = arith.constant 0 : index
    %37 = vector.load %arg7[%c0_17, %c0_18] : memref<8x128xf32, #tpu.memory_space<vmem>>, vector<8x128xf32>
    tpu.vector_store %arg7[%c0_17, %c0_18], %36 {strides = array<i32>} : memref<8x128xf32, #tpu.memory_space<vmem>>, vector<8x128xf32>,
    %c0_i32_19 = arith.constant 0 : i32
    %38 = arith.cmpi eq, %arg1, %c0_i32_19 : i32
    %39 = arith.extui %38 : i1 to i32
    %c0_i32_20 = arith.constant 0 : i32
    %40 = arith.cmpi ne, %39, %c0_i32_20 : i32
    scf.if %40 {
      %c0_21 = arith.constant 0 : index
      %c0_22 = arith.constant 0 : index
      %41 = vector.load %arg6[%c0_21, %c0_22] : memref<8x128xf32, #tpu.memory_space<vmem>>, vector<8x128xf32>
      %42 = vector.shape_cast %41 : vector<8x128xf32> to vector<1x8x128xf32>
      %cst_23 = arith.constant dense<0.000000e+00> : vector<1xf32>
      %43 = vector.multi_reduction <add>, %42, %cst_23 [1, 2] : vector<1x8x128xf32> to vector<1xf32>
      %44 = vector.shape_cast %43 : vector<1xf32> to vector<1x1x1xf32>
      %45 = vector.extract %44[0, 0, 0] : f32 from vector<1x1x1xf32>
      %46 = vector.broadcast %45 : f32 to vector<8x128xf32>
      %c0_24 = arith.constant 0 : index
      %c0_25 = arith.constant 0 : index
      %47 = vector.load %arg4[%c0_24, %c0_25] : memref<8x128xf32, #tpu.memory_space<vmem>>, vector<8x128xf32>
      tpu.vector_store %arg4[%c0_24, %c0_25], %46 {strides = array<i32>} : memref<8x128xf32, #tpu.memory_space<vmem>>, vector<8x128xf32>,
      %c0_26 = arith.constant 0 : index
      %c0_27 = arith.constant 0 : index
      %48 = vector.load %arg7[%c0_26, %c0_27] : memref<8x128xf32, #tpu.memory_space<vmem>>, vector<8x128xf32>
      %49 = vector.shape_cast %48 : vector<8x128xf32> to vector<1x8x128xf32>
      %cst_28 = arith.constant dense<0.000000e+00> : vector<1xf32>
      %50 = vector.multi_reduction <add>, %49, %cst_28 [1, 2] : vector<1x8x128xf32> to vector<1xf32>
      %51 = vector.shape_cast %50 : vector<1xf32> to vector<1x1x1xf32>
      %52 = vector.extract %51[0, 0, 0] : f32 from vector<1x1x1xf32>
      %53 = vector.broadcast %52 : f32 to vector<8x128xf32>
      %c0_29 = arith.constant 0 : index
      %c0_30 = arith.constant 0 : index
      %54 = vector.load %arg5[%c0_29, %c0_30] : memref<8x128xf32, #tpu.memory_space<vmem>>, vector<8x128xf32>
      tpu.vector_store %arg5[%c0_29, %c0_30], %53 {strides = array<i32>} : memref<8x128xf32, #tpu.memory_space<vmem>>, vector<8x128xf32>,
    } else {
    }
    return
  }
  func.func @transform_0(%arg0: i32, %arg1: i32) -> (i32, i32) {
    %c1_i32 = arith.constant 1 : i32
    %0 = arith.muli %arg0, %c1_i32 : i32
    %1 = arith.addi %0, %arg1 : i32
    %c0_i32 = arith.constant 0 : i32
    %c0_i32_0 = arith.constant 0 : i32
    return %1, %c0_i32 : i32, i32
  }
  func.func @transform_1(%arg0: i32, %arg1: i32) -> (i32, i32) {
    %c1_i32 = arith.constant 1 : i32
    %0 = arith.muli %arg0, %c1_i32 : i32
    %1 = arith.addi %0, %arg1 : i32
    %c0_i32 = arith.constant 0 : i32
    %c0_i32_0 = arith.constant 0 : i32
    return %1, %c0_i32 : i32, i32
  }
  func.func @transform_2(%arg0: i32, %arg1: i32) -> (i32, i32) {
    %c0_i32 = arith.constant 0 : i32
    %c0_i32_0 = arith.constant 0 : i32
    return %arg0, %c0_i32 : i32, i32
  }
  func.func @transform_3(%arg0: i32, %arg1: i32) -> (i32, i32) {
    %c0_i32 = arith.constant 0 : i32
    %c0_i32_0 = arith.constant 0 : i32
    return %arg0, %c0_i32 : i32, i32
  }
}

</mosaic_0001>

<llo_original>
// kernel: tpu_custom_call.1
$region0: #{tpu_custom_call.1}
  #allocation0 [shape = 'u32[]', space=smem, size = 0x4, offset = 0x4, fixed_abs, tag = 'smem constant byte address 0x4 - core index']
  #allocation1 [shape = 'u32[144,128]{1,0:T(1,128)}', space=vmem, size = 0x12000, scoped, tag = 'internal scratch']
  #allocation2 [shape = 'f32[8,128]{1,0:T(8,128)}', space=vmem, size = 0x1000, scoped, tag = 'scratch operand']
  #allocation3 [shape = 'f32[8,128]{1,0:T(8,128)}', space=vmem, size = 0x1000, scoped, tag = 'scratch operand']
  %s0 = inlined_call_operand.hbm [shape: f32[8,128], index: 0, kind: input, shape index: {}]
  %s1 = inlined_call_operand.hbm [shape: f32[8,128], index: 1, kind: input, shape index: {}]
  %s2 = inlined_call_operand.hbm [shape: f32[8,128], index: 2, kind: output, shape index: {0}]
  %s3 = inlined_call_operand.hbm [shape: f32[8,128], index: 3, kind: output, shape index: {1}]
  %4 = xla_tuple %s2, %s3
  %s5 = sld [smem:[#allocation0]]
  $region42: #{tpu_custom_call.1} parent=0
    _
  %s7 = ssub.s32 1, %s5
  %s8 = scalar_select 0, %s7, %s5
  $region1: #{tpu_custom_call.1} parent=0
    #allocation4 [shape = 'u8[4096]{0}', space=vmem, size = 0x1000, scoped, tag = 'input window, operand 0, single buffered']
    #allocation5 [shape = 's32[1]{0}', space=sflag, size = 0x4, scoped, tag = 'scoped memory for tpu_custom_call.1']
    #allocation6 [shape = 's32[1]{0}', space=sflag, size = 0x4, scoped, tag = 'scoped memory for tpu_custom_call.1']
    #allocation7 [shape = 'u8[4096]{0}', space=vmem, size = 0x1000, scoped, tag = 'input window, operand 1, single buffered']
    #allocation8 [shape = 's32[1]{0}', space=sflag, size = 0x4, scoped, tag = 'scoped memory for tpu_custom_call.1']
    #allocation9 [shape = 'u8[4096]{0}', space=vmem, size = 0x1000, scoped, tag = 'output window, operand 0, single buffered']
    #allocation10 [shape = 'u8[4096]{0}', space=vmem, size = 0x1000, scoped, tag = 'output window, operand 1, single buffered']
    #allocation11 [shape = 's32[1]{0}', space=sflag, size = 0x4, scoped, tag = 'scoped memory for tpu_custom_call.1']
    %9 = vsyncpa [#allocation5], 0
    %10 = vsyncpa [#allocation8], 0
    %11 = vsyncpa [#allocation6], 0
    %12 = vsyncpa [#allocation11], 0
    // Predicated region
    $region2: #{tpu_custom_call.1} parent=1 // pred_check
      _
    $region3: #{tpu_custom_call.1} parent=1 // pred_check_branch
      %14 = sbr.rel (0) target = $region5
    $region4: #{tpu_custom_call.1} parent=1 // pred_region
      %s15 = sadd.s32 0, 0
      %s17 = ssub.s32 128, 128
      %18 = vsyncadd [#allocation5], %s17
      %s19 = smul.addr %s15, 128
      %s20 = scalar_lea.hbm %s0, %s19
      %s22 = sshll.u32 [#allocation4], 4
      %s23 = int_to_ptr.vmem [resolvable:$true] %s22
      %25 = dma.hbm_to_vmem [thread:$0]  %s20, 128, %s23, [#allocation5]
    $region5: #{tpu_custom_call.1} parent=1 // pred_fallthru
      _
    // Predicated region
    $region6: #{tpu_custom_call.1} parent=1 // pred_check
      _
    $region7: #{tpu_custom_call.1} parent=1 // pred_check_branch
      %27 = sbr.rel (0) target = $region9
    $region8: #{tpu_custom_call.1} parent=1 // pred_region
      %s28 = sadd.s32 0, 0
      %s30 = ssub.s32 128, 128
      %31 = vsyncadd [#allocation8], %s30
      %s32 = smul.addr %s28, 128
      %s33 = scalar_lea.hbm %s1, %s32
      %s35 = sshll.u32 [#allocation7], 4
      %s36 = int_to_ptr.vmem [resolvable:$true] %s35
      %38 = dma.hbm_to_vmem [thread:$0]  %s33, 128, %s36, [#allocation8]
    $region9: #{tpu_custom_call.1} parent=1 // pred_fallthru
      _
    // Predicated region
    $region10: #{tpu_custom_call.1} parent=1 // pred_check
      _
    $region11: #{tpu_custom_call.1} parent=1 // pred_check_branch
      %40 = sbr.rel (0) target = $region13
    $region12: #{tpu_custom_call.1} parent=1 // pred_region
      %41 = dma.done [#allocation5], 128
    $region13: #{tpu_custom_call.1} parent=1 // pred_fallthru
      _
    // Predicated region
    $region14: #{tpu_custom_call.1} parent=1 // pred_check
      _
    $region15: #{tpu_custom_call.1} parent=1 // pred_check_branch
      %43 = sbr.rel (0) target = $region17
    $region16: #{tpu_custom_call.1} parent=1 // pred_region
      %44 = dma.done [#allocation8], 128
    $region17: #{tpu_custom_call.1} parent=1 // pred_fallthru
      _
    %s45 = sadd.s32 0, 0
    %s46 = sadd.s32 0, 0
    %p47 = scmp.eq.s32.totalorder 0, 0
    // Predicated region
    $region18: #{tpu_custom_call.1} parent=1 // pred_check
      %p48 = pneg %p47
    $region19: #{tpu_custom_call.1} parent=1 // pred_check_branch
      %50 = sbr.rel (%p48) target = $region21
    $region20: #{tpu_custom_call.1} parent=1 // pred_region
      %51 = vst [vmem:[#allocation2] sm:$0xff] 0.0
      %52 = vst [vmem:[#allocation3] sm:$0xff] 0.0
    $region21: #{tpu_custom_call.1} parent=1 // pred_fallthru
      _
    %v53 = vld [vmem:[#allocation4] sm:$0xff]
    %v54 = vld [vmem:[#allocation7] sm:$0xff]
    %v55 = vand.u32 2147483647, %v53
    %v56 = vsub.f32 0.0, %v55
    %v57 = vmul.f32 %v56, 1.442695
    %v58 = vpow.pop %v57
    %v59 = vmax.f32 %v53, 0.0
    %v60 = vmul.f32 %v53, %v54
    %v61 = vsub.f32 %v59, %v60
    %v62 = vadd.f32 %v58, 1.0
    %v63 = vlog2.pop %v62
    %v64 = vmul.f32 %v63, 0.6931472
    %v65 = vadd.f32 %v61, %v64
    %vm66 = vcmp.ge.f32.partialorder %v53, 0.0
    %vm67 = vcmp.gt.f32.partialorder %v54, 0.5
    %vm68 = vmxor %vm66, %vm67
    %v69 = vsel %vm68, %v58, 1.0
    %v70 = vrcp.pop %v62
    %v71 = vmul.f32 %v69, %v70
    %v72 = vsub.f32 1.0, %v71
    %v73 = vmul.f32 %v72, %v72
    %v74 = vmul.f32 %v73, %v65
    %v75 = vld [vmem:[#allocation2] sm:$0xff]
    %v76 = vadd.f32 %v75, %v74
    %77 = vst [vmem:[#allocation2] sm:$0xff] %v76
    %v78 = vld [vmem:[#allocation3] sm:$0xff]
    %v79 = vadd.f32 %v78, %v54
    %80 = vst [vmem:[#allocation3] sm:$0xff] %v79
    // Predicated region
    $region22: #{tpu_custom_call.1} parent=1 // pred_check
      %p81 = pneg %p47
    $region23: #{tpu_custom_call.1} parent=1 // pred_check_branch
      %83 = sbr.rel (%p81) target = $region25
    $region24: #{tpu_custom_call.1} parent=1 // pred_region
      %v84 = vld [vmem:[#allocation2] sm:$0xff]
      %85 = vadd.xlane.f32.xlu0 %v84
      %v86 = vpop.xlane.xlu0 %85
      %v87 = vrot.slane %v86, 4
      %v88 = vadd.f32 %v86, %v87
      %v89 = vrot.slane %v88, 2
      %v90 = vadd.f32 %v88, %v89
      %v91 = vrot.slane %v90, 1
      %v92 = vadd.f32 %v90, %v91
      %s93 = vtos %v92
      %v94 = vstv %s93
      %95 = vst [vmem:[#allocation9] sm:$0xff] %v94
      %v96 = vld [vmem:[#allocation3] sm:$0xff]
      %97 = vadd.xlane.f32.xlu0 %v96
      %v98 = vpop.xlane.xlu0 %97
      %v99 = vrot.slane %v98, 4
      %v100 = vadd.f32 %v98, %v99
      %v101 = vrot.slane %v100, 2
      %v102 = vadd.f32 %v100, %v101
      %v103 = vrot.slane %v102, 1
      %v104 = vadd.f32 %v102, %v103
      %s105 = vtos %v104
      %v106 = vstv %s105
      %107 = vst [vmem:[#allocation10] sm:$0xff] %v106
    $region25: #{tpu_custom_call.1} parent=1 // pred_fallthru
      _
    // Predicated region
    $region26: #{tpu_custom_call.1} parent=1 // pred_check
      _
    $region27: #{tpu_custom_call.1} parent=1 // pred_check_branch
      %109 = sbr.rel (0) target = $region29
    $region28: #{tpu_custom_call.1} parent=1 // pred_region
      %s111 = ssub.s32 128, 128
      %112 = vsyncadd [#allocation6], %s111
      %s114 = sshll.u32 [#allocation9], 4
      %s115 = int_to_ptr.vmem [resolvable:$true] %s114
      %117 = dma.vmem_to_hbm [thread:$0]  %s115, 128, %s2, [#allocation6]
    $region29: #{tpu_custom_call.1} parent=1 // pred_fallthru
      _
    // Predicated region
    $region30: #{tpu_custom_call.1} parent=1 // pred_check
      _
    $region31: #{tpu_custom_call.1} parent=1 // pred_check_branch
      %119 = sbr.rel (0) target = $region33
    $region32: #{tpu_custom_call.1} parent=1 // pred_region
      %s121 = ssub.s32 128, 128
      %122 = vsyncadd [#allocation11], %s121
      %s124 = sshll.u32 [#allocation10], 4
      %s125 = int_to_ptr.vmem [resolvable:$true] %s124
      %127 = dma.vmem_to_hbm [thread:$0]  %s125, 128, %s3, [#allocation11]
    $region33: #{tpu_custom_call.1} parent=1 // pred_fallthru
      _
    // Predicated region
    $region34: #{tpu_custom_call.1} parent=1 // pred_check
      _
    $region35: #{tpu_custom_call.1} parent=1 // pred_check_branch
      %129 = sbr.rel (0) target = $region37
    $region36: #{tpu_custom_call.1} parent=1 // pred_region
      %130 = dma.done [#allocation6], 128
    $region37: #{tpu_custom_call.1} parent=1 // pred_fallthru
      _
    // Predicated region
    $region38: #{tpu_custom_call.1} parent=1 // pred_check
      _
    $region39: #{tpu_custom_call.1} parent=1 // pred_check_branch
      %132 = sbr.rel (0) target = $region41
    $region40: #{tpu_custom_call.1} parent=1 // pred_region
      %133 = dma.done [#allocation11], 128
    $region41: #{tpu_custom_call.1} parent=1 // pred_fallthru
      _
    %134 = vsyncpa [#allocation5], 1
    %135 = vsyncpa [#allocation8], 1
    %136 = vsyncpa [#allocation6], 1
    %137 = vsyncpa [#allocation11], 1

</llo_original>
